<compile_context>
chip_gen: v5e
topology: v5e:2x2
jax: 0.10.0
libtpu: 0.0.40
codegen_flags: <defaults>
</compile_context>

<pallas_src>
import jax
import jax.numpy as jnp
from jax.experimental import pallas as pl
from jax.experimental.pallas import tpu as pltpu


def _round_up(x, m):
    return (x + m - 1) // m * m


# ----------------------------------------------------------------------------
# Tile pickers
# ----------------------------------------------------------------------------
def _pick_tm(M):
    """Return (tm, Mp): tm multiple of 8, Mp multiple of tm, minimal padding."""
    Mp8 = _round_up(M, 8)
    if Mp8 <= 512:
        return Mp8, Mp8
    best_tm, best_mp = 512, _round_up(Mp8, 512)
    for c in (512, 448, 384, 320, 256, 192, 128):
        mp = _round_up(Mp8, c)
        if mp < best_mp:
            best_tm, best_mp = c, mp
    return best_tm, best_mp


def _pick_tk(Kp):
    if Kp <= 512:
        return Kp
    for c in (512, 384, 256, 128):
        if Kp % c == 0:
            return c
    return 128


def _pick_tn(N):
    if N <= 512:
        return N
    for c in (512, 384, 256, 128):
        if N % c == 0:
            return c
    return N


def _pad_k_for_weights(K):
    """K layout used for stored weights: multiple of 128, except tiny K kept."""
    if K <= 128 or K % 128 == 0:
        return K
    return _round_up(K, 128)


# ----------------------------------------------------------------------------
# Fused matmul kernel:  out = act((A @ B) + bias [+ residual])
#   A, B, residual are bf16; accumulation + epilogue in f32.
# ----------------------------------------------------------------------------
def _make_matmul_kernel(relu, has_residual):
    def kernel(a_ref, b_ref, bias_ref, *rest):
        if has_residual:
            res_ref, o_ref, acc_ref = rest
        else:
            o_ref, acc_ref = rest

        k = pl.program_id(2)

        @pl.when(k == 0)
        def _():
            acc_ref[...] = jnp.zeros_like(acc_ref)

        acc_ref[...] += jnp.dot(
            a_ref[...], b_ref[...], preferred_element_type=jnp.float32
        )

        @pl.when(k == pl.num_programs(2) - 1)
        def _():
            y = acc_ref[...] + bias_ref[...]
            if has_residual:
                y = y + res_ref[...].astype(jnp.float32)
            if relu:
                y = jnp.maximum(y, 0.0)
            o_ref[...] = y.astype(o_ref.dtype)

    return kernel


def fused_matmul(a, w, bias, residual=None, relu=False, out_dtype=jnp.bfloat16):
    """a: (M, K) activations, w: (Kp, N) bf16 pre-padded weights (Kp >= K,
    zero-padded), bias: (1, N) f32, residual: (M, N) or None."""
    M, K = a.shape
    Kp, N = w.shape
    assert K <= Kp
    assert bias.shape == (1, N)

    tm, Mp = _pick_tm(M)
    tk = _pick_tk(Kp)
    tn = _pick_tn(N)

    # Megacore (v7x has 2 TCs): make sure the parallel part of the grid has at
    # least 2 blocks when that is cheap to arrange.
    if (Mp // tm) * (N // tn) == 1:
        if N % 256 == 0:
            tn = N // 2
        elif tm % 16 == 0 and tm > 8:
            tm = tm // 2  # Mp == old tm, so Mp % tm == 0 still holds

    a = a.astype(jnp.bfloat16)
    if (Mp != M) or (Kp != K):
        a = jnp.pad(a, ((0, Mp - M), (0, Kp - K)))

    has_res = residual is not None
    inputs = [a, w, bias]
    in_specs = [
        pl.BlockSpec((tm, tk), lambda i, j, k: (i, k)),
        pl.BlockSpec((tk, tn), lambda i, j, k: (k, j)),
        pl.BlockSpec((1, tn), lambda i, j, k: (0, j)),
    ]
    if has_res:
        r = residual.astype(jnp.bfloat16)
        if Mp != M:
            r = jnp.pad(r, ((0, Mp - M), (0, 0)))
        inputs.append(r)
        in_specs.append(pl.BlockSpec((tm, tn), lambda i, j, k: (i, j)))

    # VMEM need: double-buffered input/output tiles + f32 accumulator scratch.
    tile_bytes = (
        2 * 2 * (tm * tk + tk * tn + tm * tn + (tm * tn if has_res else 0))
        + 2 * tn * 4
        + tm * tn * 4
    )
    vmem_limit = int(min(max(2 * tile_bytes + (8 << 20), 24 << 20), 56 << 20))

    out = pl.pallas_call(
        _make_matmul_kernel(relu, has_res),
        out_shape=jax.ShapeDtypeStruct((Mp, N), out_dtype),
        grid_spec=pltpu.PrefetchScalarGridSpec(
            num_scalar_prefetch=0,
            grid=(Mp // tm, N // tn, Kp // tk),
            in_specs=in_specs,
            out_specs=pl.BlockSpec((tm, tn), lambda i, j, k: (i, j)),
            scratch_shapes=[pltpu.VMEM((tm, tn), jnp.float32)],
        ),
        compiler_params=pltpu.CompilerParams(
            dimension_semantics=("parallel", "parallel", "arbitrary"),
            vmem_limit_bytes=vmem_limit,
        ),
    )(*inputs)
    if Mp != M:
        out = out[:M]
    return out


# ----------------------------------------------------------------------------
# Conv (im2col glue for kh>1, plain reshape for 1x1) + fused matmul kernel
# ----------------------------------------------------------------------------
def _im2col(x, kh, kw, stride, pad):
    # x: (N, H, W, C) -> (N*Ho*Wo, kh*kw*C), column ordering = (dy, dx, c)
    N, H, W, C = x.shape
    Ho = (H + 2 * pad - kh) // stride + 1
    Wo = (W + 2 * pad - kw) // stride + 1
    x_p = jnp.pad(x, ((0, 0), (pad, pad), (pad, pad), (0, 0)))
    cols = []
    for dy in range(kh):
        for dx in range(kw):
            cols.append(
                x_p[:, dy : dy + Ho * stride : stride, dx : dx + Wo * stride : stride, :]
            )
    patches = jnp.stack(cols, axis=3)  # (N, Ho, Wo, kh*kw, C)
    return patches.reshape(N * Ho * Wo, kh * kw * C), Ho, Wo


def conv_bn(x, w2d, bias, kh, kw, stride, pad, relu, residual=None,
            out_dtype=jnp.bfloat16):
    """x: NHWC bf16, w2d: (Kp, Cout) bf16 (BN scale folded, K pre-padded)."""
    N = x.shape[0]
    if kh == 1 and kw == 1 and pad == 0:
        xs = x[:, ::stride, ::stride, :] if stride > 1 else x
        Ho, Wo = xs.shape[1], xs.shape[2]
        a = xs.reshape(N * Ho * Wo, xs.shape[3])
    else:
        a, Ho, Wo = _im2col(x, kh, kw, stride, pad)
    cout = w2d.shape[1]
    res2d = None
    if residual is not None:
        res2d = residual.reshape(N * Ho * Wo, cout)
    out = fused_matmul(a, w2d, bias, residual=res2d, relu=relu,
                       out_dtype=out_dtype)
    return out.reshape(N, Ho, Wo, cout)


# ----------------------------------------------------------------------------
# Pooling kernels (gridded so they fit VMEM at real input sizes)
# ----------------------------------------------------------------------------
def _maxpool_kernel(x_ref, o_ref):
    o_ref[...] = jnp.max(x_ref[...], axis=0)


def maxpool2d(x, k=3, stride=2, pad=1, tm=512):
    N, H, W, C = x.shape
    Ho = (H + 2 * pad - k) // stride + 1
    Wo = (W + 2 * pad - k) // stride + 1
    neg = jnp.finfo(x.dtype).min
    x_p = jnp.pad(x, ((0, 0), (pad, pad), (pad, pad), (0, 0)), constant_values=neg)
    wins = []
    for dy in range(k):
        for dx in range(k):
            wins.append(
                x_p[:, dy : dy + Ho * stride : stride, dx : dx + Wo * stride : stride, :]
            )
    M = N * Ho * Wo
    stacked = jnp.stack(wins, axis=0).reshape(k * k, M, C)

    tm = min(tm, _round_up(M, 8))
    Mp = _round_up(M, tm)
    if Mp != M:
        stacked = jnp.pad(stacked, ((0, 0), (0, Mp - M), (0, 0)),
                          constant_values=neg)

    out = pl.pallas_call(
        _maxpool_kernel,
        out_shape=jax.ShapeDtypeStruct((Mp, C), x.dtype),
        grid_spec=pltpu.PrefetchScalarGridSpec(
            num_scalar_prefetch=0,
            grid=(Mp // tm,),
            in_specs=[pl.BlockSpec((k * k, tm, C), lambda i: (0, i, 0))],
            out_specs=pl.BlockSpec((tm, C), lambda i: (i, 0)),
        ),
        compiler_params=pltpu.CompilerParams(
            dimension_semantics=("parallel",),
            vmem_limit_bytes=32 << 20,
        ),
    )(stacked)
    if Mp != M:
        out = out[:M]
    return out.reshape(N, Ho, Wo, C)


def _avgpool_kernel(x_ref, o_ref):
    o_ref[...] = jnp.mean(x_ref[...].astype(jnp.float32), axis=1).astype(o_ref.dtype)


def global_avgpool(x, tc=512):
    # AdaptiveAvgPool2d((1,1)) == global mean over H, W.  Output f32.
    N, H, W, C = x.shape
    x2 = x.reshape(N, H * W, C)
    tc = min(tc, _round_up(C, 128))
    Cp = _round_up(C, tc)
    if Cp != C:
        x2 = jnp.pad(x2, ((0, 0), (0, 0), (0, Cp - C)))
    out = pl.pallas_call(
        _avgpool_kernel,
        out_shape=jax.ShapeDtypeStruct((N, Cp), jnp.float32),
        grid_spec=pltpu.PrefetchScalarGridSpec(
            num_scalar_prefetch=0,
            grid=(Cp // tc,),
            in_specs=[pl.BlockSpec((N, H * W, tc), lambda c: (0, 0, c))],
            out_specs=pl.BlockSpec((N, tc), lambda c: (0, c)),
        ),
        compiler_params=pltpu.CompilerParams(
            dimension_semantics=("parallel",),
            vmem_limit_bytes=32 << 20,
        ),
    )(x2)
    if Cp != C:
        out = out[:, :C]
    return out


# ----------------------------------------------------------------------------
# Parameter construction (deterministic, synthetic); BN scale folded into
# conv weights, weights pre-reshaped to GEMM layout, K-padded + bf16 at init.
# ----------------------------------------------------------------------------
_BN_EPS = 1e-5


def _init_conv(key, kh, kw, cin, cout):
    std = (2.0 / (kh * kw * cin)) ** 0.5
    return jax.random.normal(key, (kh, kw, cin, cout), jnp.float32) * std


def _init_bn(key, c):
    k1, k2 = jax.random.split(key)
    gamma = 1.0 + 0.1 * jax.random.normal(k1, (c,), jnp.float32)
    beta = 0.1 * jax.random.normal(k2, (c,), jnp.float32)
    running_mean = jnp.zeros((c,), jnp.float32)
    running_var = jnp.ones((c,), jnp.float32)
    scale = gamma / jnp.sqrt(running_var + _BN_EPS)
    bias = beta - running_mean * scale
    return scale, bias


def _fold_conv_bn(w, scale):
    """Fold per-channel BN scale into conv weights; GEMM layout, K-padded, bf16."""
    kh, kw, cin, cout = w.shape
    K = kh * kw * cin
    w2d = (w * scale[None, None, None, :]).reshape(K, cout)
    Kp = _pad_k_for_weights(K)
    if Kp != K:
        w2d = jnp.pad(w2d, ((0, Kp - K), (0, 0)))
    return w2d.astype(jnp.bfloat16)


def _prep_bias(b):
    return b.reshape(1, -1).astype(jnp.float32)


def _init_bottleneck(key, cin, couts, stride, increase_dim):
    keys = jax.random.split(key, 8)
    w1 = _init_conv(keys[0], 1, 1, cin, couts[0])
    s1, b1 = _init_bn(keys[1], couts[0])
    w2 = _init_conv(keys[2], 3, 3, couts[0], couts[1])
    s2, b2 = _init_bn(keys[3], couts[1])
    w3 = _init_conv(keys[4], 1, 1, couts[1], couts[2])
    s3, b3 = _init_bn(keys[5], couts[2])
    p = {
        "w1": _fold_conv_bn(w1, s1), "b1": _prep_bias(b1),
        "w2": _fold_conv_bn(w2, s2), "b2": _prep_bias(b2),
        "w3": _fold_conv_bn(w3, s3), "b3": _prep_bias(b3),
        "stride": stride,
        "increase_dim": increase_dim,
    }
    if increase_dim:
        wsc = _init_conv(keys[6], 1, 1, cin, couts[2])
        ssc, bsc = _init_bn(keys[7], couts[2])
        p["w_sc"] = _fold_conv_bn(wsc, ssc)
        p["b_sc"] = _prep_bias(bsc)
    return p


_BLOCK_CFG = (
    [(64, (64, 64, 256), 1, True)]
    + [(256, (64, 64, 256), 1, False)] * 2
    + [(256, (128, 128, 512), 2, True)]
    + [(512, (128, 128, 512), 1, False)] * 3
    + [(512, (256, 256, 1024), 2, True)]
    + [(1024, (256, 256, 1024), 1, False)] * 5
    + [(1024, (512, 512, 2048), 2, True)]
    + [(2048, (512, 512, 2048), 1, False)] * 2
)


def init_resnet(key, in_channels, out_channels):
    n_blocks = len(_BLOCK_CFG)
    keys = jax.random.split(key, 3 + n_blocks)
    w1 = _init_conv(keys[0], 7, 7, in_channels, 64)
    s1, b1 = _init_bn(keys[1], 64)
    params = {
        "conv1_w": _fold_conv_bn(w1, s1),
        "conv1_b": _prep_bias(b1),
        "blocks": [
            _init_bottleneck(keys[3 + i], *cfg) for i, cfg in enumerate(_BLOCK_CFG)
        ],
    }
    kfw, kfb = jax.random.split(keys[2])
    std = 1.0 / (2048.0 ** 0.5)
    params["fc_w"] = (
        jax.random.normal(kfw, (2048, out_channels), jnp.float32) * std
    ).astype(jnp.bfloat16)
    params["fc_b"] = _prep_bias(
        jax.random.normal(kfb, (out_channels,), jnp.float32) * std
    )
    return params


# ----------------------------------------------------------------------------
# Forward
# ----------------------------------------------------------------------------
def bottleneck_forward(x, p):
    y = conv_bn(x, p["w1"], p["b1"], 1, 1, stride=1, pad=0, relu=True)
    y = conv_bn(y, p["w2"], p["b2"], 3, 3, stride=p["stride"], pad=1, relu=True)
    if p["increase_dim"]:
        sc = conv_bn(x, p["w_sc"], p["b_sc"], 1, 1, stride=p["stride"], pad=0,
                     relu=False)
    else:
        sc = x
    # conv1_3 + norm1_3 + residual add + final ReLU fused into one kernel.
    y = conv_bn(y, p["w3"], p["b3"], 1, 1, stride=1, pad=0, relu=True,
                residual=sc)
    return y


def resnet_forward(params, x_nchw):
    x = jnp.transpose(x_nchw, (0, 2, 3, 1)).astype(jnp.bfloat16)  # NCHW -> NHWC
    x = conv_bn(x, params["conv1_w"], params["conv1_b"], 7, 7,
                stride=2, pad=3, relu=True)
    x = maxpool2d(x, k=3, stride=2, pad=1)
    for p in params["blocks"]:
        x = bottleneck_forward(x, p)
    x = global_avgpool(x)  # (N, 2048) f32
    out = fused_matmul(x, params["fc_w"], params["fc_b"], relu=False,
                       out_dtype=jnp.float32)
    return out


# ----------------------------------------------------------------------------
if __name__ == "__main__":
    key = jax.random.PRNGKey(0)
    k_param, k_input = jax.random.split(key)

    in_channels = 4
    num_classes = 10
    params = init_resnet(k_param, in_channels, num_classes)

    x = jax.random.normal(k_input, (2, in_channels, 16, 16), jnp.float32)  # NCHW

    out = resnet_forward(params, x)
    out = jax.block_until_ready(out)
    assert out.shape == (2, num_classes), out.shape
    assert bool(jnp.all(jnp.isfinite(out)))
    print("KERNEL_OK")
</pallas_src>

<mosaic_0001>
module attributes {stable_mosaic.version = 11 : i64} {
  func.func @kernel(%arg0: i32, %arg1: i32, %arg2: i32, %arg3: memref<64x256xbf16, #tpu.memory_space<vmem>>, %arg4: memref<256x64xbf16, #tpu.memory_space<vmem>>, %arg5: memref<1x64xf32, #tpu.memory_space<vmem>>, %arg6: memref<64x64xbf16, #tpu.memory_space<vmem>>, %arg7: memref<64x64xf32, #tpu.memory_space<vmem>>) attributes {dimension_semantics = [#tpu.dimension_semantics<parallel>, #tpu.dimension_semantics<parallel>, #tpu.dimension_semantics<arbitrary>], iteration_bounds = array<i64: 2, 1, 1>, scalar_prefetch = 0 : i64, scratch_operands = 1 : i64, tpu.core_type = #tpu.core_type<tc>, window_params = [{transform_indices = @transform_0, window_bounds = array<i64: 64, 256>}, {transform_indices = @transform_1, window_bounds = array<i64: 256, 64>}, {transform_indices = @transform_2, window_bounds = array<i64: 1, 64>}, {transform_indices = @transform_3, window_bounds = array<i64: 64, 64>}]} {
    %c0_i32 = arith.constant 0 : i32
    %0 = arith.cmpi eq, %arg2, %c0_i32 : i32
    %1 = arith.extui %0 : i1 to i32
    %c0_i32_0 = arith.constant 0 : i32
    %2 = arith.cmpi ne, %1, %c0_i32_0 : i32
    scf.if %2 {
      %cst_10 = arith.constant 0.000000e+00 : f32
      %12 = vector.broadcast %cst_10 : f32 to vector<64x64xf32>
      %c0_11 = arith.constant 0 : index
      %c0_12 = arith.constant 0 : index
      %13 = vector.load %arg7[%c0_11, %c0_12] : memref<64x64xf32, #tpu.memory_space<vmem>>, vector<64x64xf32>
      tpu.vector_store %arg7[%c0_11, %c0_12], %12 {strides = array<i32>} : memref<64x64xf32, #tpu.memory_space<vmem>>, vector<64x64xf32>,
    } else {
    }
    %c0 = arith.constant 0 : index
    %c0_1 = arith.constant 0 : index
    %3 = vector.load %arg7[%c0, %c0_1] : memref<64x64xf32, #tpu.memory_space<vmem>>, vector<64x64xf32>
    %c0_2 = arith.constant 0 : index
    %c0_3 = arith.constant 0 : index
    %4 = vector.load %arg3[%c0_2, %c0_3] : memref<64x256xbf16, #tpu.memory_space<vmem>>, vector<64x256xbf16>
    %c0_4 = arith.constant 0 : index
    %c0_5 = arith.constant 0 : index
    %5 = vector.load %arg4[%c0_4, %c0_5] : memref<256x64xbf16, #tpu.memory_space<vmem>>, vector<256x64xbf16>
    %cst = arith.constant dense<0.000000e+00> : vector<64x64xf32>
    %6 = tpu.matmul %4, %5, %cst {dimension_numbers = #tpu.dot_dimension_numbers<[1], [0], [0], [1], [0, 0, 1, 1], [], []>} : vector<64x256xbf16>, vector<256x64xbf16>, vector<64x64xf32> -> vector<64x64xf32>
    %7 = arith.addf %3, %6 : vector<64x64xf32>
    %c0_6 = arith.constant 0 : index
    %c0_7 = arith.constant 0 : index
    %8 = vector.load %arg7[%c0_6, %c0_7] : memref<64x64xf32, #tpu.memory_space<vmem>>, vector<64x64xf32>
    tpu.vector_store %arg7[%c0_6, %c0_7], %7 {strides = array<i32>} : memref<64x64xf32, #tpu.memory_space<vmem>>, vector<64x64xf32>,
    %c0_i32_8 = arith.constant 0 : i32
    %9 = arith.cmpi eq, %arg2, %c0_i32_8 : i32
    %10 = arith.extui %9 : i1 to i32
    %c0_i32_9 = arith.constant 0 : i32
    %11 = arith.cmpi ne, %10, %c0_i32_9 : i32
    scf.if %11 {
      %c0_10 = arith.constant 0 : index
      %c0_11 = arith.constant 0 : index
      %12 = vector.load %arg7[%c0_10, %c0_11] : memref<64x64xf32, #tpu.memory_space<vmem>>, vector<64x64xf32>
      %c0_12 = arith.constant 0 : index
      %c0_13 = arith.constant 0 : index
      %13 = vector.load %arg5[%c0_12, %c0_13] : memref<1x64xf32, #tpu.memory_space<vmem>>, vector<1x64xf32>
      %14 = vector.broadcast %13 : vector<1x64xf32> to vector<64x64xf32>
      %15 = arith.addf %12, %14 : vector<64x64xf32>
      %cst_14 = arith.constant 0.000000e+00 : f32
      %16 = vector.broadcast %cst_14 : f32 to vector<64x64xf32>
      %17 = arith.maximumf %15, %16 : vector<64x64xf32>
      %18 = arith.truncf %17 : vector<64x64xf32> to vector<64x64xbf16>
      %c0_15 = arith.constant 0 : index
      %c0_16 = arith.constant 0 : index
      %19 = vector.load %arg6[%c0_15, %c0_16] : memref<64x64xbf16, #tpu.memory_space<vmem>>, vector<64x64xbf16>
      tpu.vector_store %arg6[%c0_15, %c0_16], %18 {strides = array<i32>} : memref<64x64xbf16, #tpu.memory_space<vmem>>, vector<64x64xbf16>,
    } else {
    }
    return
  }
  func.func @transform_0(%arg0: i32, %arg1: i32, %arg2: i32) -> (i32, i32) {
    %c0_i32 = arith.constant 0 : i32
    return %arg0, %arg2 : i32, i32
  }
  func.func @transform_1(%arg0: i32, %arg1: i32, %arg2: i32) -> (i32, i32) {
    %c0_i32 = arith.constant 0 : i32
    return %arg2, %arg1 : i32, i32
  }
  func.func @transform_2(%arg0: i32, %arg1: i32, %arg2: i32) -> (i32, i32) {
    %c0_i32 = arith.constant 0 : i32
    %c0_i32_0 = arith.constant 0 : i32
    return %c0_i32, %arg1 : i32, i32
  }
  func.func @transform_3(%arg0: i32, %arg1: i32, %arg2: i32) -> (i32, i32) {
    %c0_i32 = arith.constant 0 : i32
    return %arg0, %arg1 : i32, i32
  }
}

</mosaic_0001>

<llo_original>
// kernel: tpu_custom_call.1
$region0: #{tpu_custom_call.1}
  #allocation0 [shape = 'u32[]', space=smem, size = 0x4, offset = 0x4, fixed_abs, tag = 'smem constant byte address 0x4 - core index']
  #allocation1 [shape = 'u32[72,128]{1,0:T(1,128)}', space=vmem, size = 0x9000, scoped, tag = 'internal scratch']
  #allocation2 [shape = 'f32[64,64]{1,0:T(8,128)}', space=vmem, size = 0x8000, scoped, tag = 'scratch operand']
  %s0 = inlined_call_operand.vmem [shape: bf16[128,256], index: 0, kind: input, shape index: {}]
  %s1 = inlined_call_operand.vmem [shape: bf16[256,64], index: 1, kind: input, shape index: {}]
  %s2 = inlined_call_operand.vmem [shape: f32[1,64], index: 2, kind: input, shape index: {}]
  %s3 = inlined_call_operand.vmem [shape: bf16[128,64], index: 3, kind: output, shape index: {}]
  %s4 = sld [smem:[#allocation0]]
  $region53: #{tpu_custom_call.1} parent=0
    _
  %s6 = ssub.s32 1, %s4
  %s7 = scalar_select 0, %s6, %s4
  loop: start=0, step=1, limit=4
  $region2: #{tpu_custom_call.1} parent=0 // loop_pre_header
    _
  $region3: #{tpu_custom_call.1} parent=0 // loop_header
    %s9 = sphi 0, %s13
    %p10 = scmp.ge.s32.totalorder %s9, 4
    %s16 = sphi 0, %s35
    %s17 = sphi 0, %s31
    %s18 = sphi 0, %s27
    %s19 = sphi 0, %s16
    %s20 = sphi 0, %s17
    %s21 = sphi 0, %s18
    %s22 = sphi 0, %s19
    %s23 = sphi 0, %s20
    %s24 = sphi 0, %s21
    %s40 = sphi 0, %s42
    %s43 = sphi 0, %s40
    %s44 = sphi 0, %s43
    %s60 = sphi 0, %s44
    %s68 = sphi 0, %s70
    %s71 = sphi 0, %s68
    %s72 = sphi 0, %s71
    %s88 = sphi 0, %s72
    %s94 = sphi 0, %s96
    %s97 = sphi 0, %s94
    %s98 = sphi 0, %s97
    %s114 = sphi 0, %s98
    %s122 = sphi 0, %s124
    %s125 = sphi 0, %s122
    %s126 = sphi 0, %s125
    %s142 = sphi 0, %s126
  $region4: #{tpu_custom_call.1} parent=0 // loop_header_branch
    %12 = sbr.rel (%p10) target = $region8
  $region5: #{tpu_custom_call.1} parent=0 // loop_body
    %s14 = ssub.s32 %s9, 1
    %s15 = ssub.s32 %s9, 2
    %s25 = sadd.s32 1, %s18
    %p26 = scmp.ge.s32.totalorder %s25, 1
    %s27 = scalar_select %p26, 0, %s25
    %s28 = sadd.s32 1, %s17
    %s29 = scalar_select %p26, %s28, %s17
    %p30 = scmp.ge.s32.totalorder %s29, 1
    %s31 = scalar_select %p30, 0, %s29
    %s32 = sadd.s32 1, %s16
    %s33 = scalar_select %p30, %s32, %s16
    %p34 = scmp.ge.s32.totalorder %s33, 2
    %s35 = scalar_select %p34, 0, %s33
    %s36 = ssub.s32 %s16, %s35
    %s37 = ssub.s32 %s18, %s27
    %s38 = sor.u32 %s36, %s37
    %p39 = scmp.eq.s32.totalorder %s38, 0
    %s41 = sadd.s32 %s40, 1
    %s42 = scalar_select %p39, %s40, %s41
    %p45 = pneg %p39
    %p46 = scmp.eq.s32.totalorder %s9, 1
    %p47 = por %p45, %p46
    %p48 = scmp.ne.s32.totalorder %s40, %s43
    %p49 = scmp.eq.s32.totalorder %s9, 0
    %p50 = por %p48, %p49
    %p51 = scmp.ne.s32.totalorder %s40, %s43
    %p52 = scmp.eq.s32.totalorder %s14, 1
    %p53 = por %p51, %p52
    %p54 = scmp.ne.s32.totalorder %s43, %s44
    %p55 = scmp.eq.s32.totalorder %s14, 0
    %p56 = por %p54, %p55
    %p57 = scmp.ne.s32.totalorder %s43, %s44
    %p58 = scmp.eq.s32.totalorder %s15, 1
    %p59 = por %p57, %p58
    %p61 = scmp.ne.s32.totalorder %s44, %s60
    %p62 = scmp.eq.s32.totalorder %s15, 0
    %p63 = por %p61, %p62
    %s64 = ssub.s32 %s18, %s27
    %s65 = ssub.s32 %s17, %s31
    %s66 = sor.u32 %s64, %s65
    %p67 = scmp.eq.s32.totalorder %s66, 0
    %s69 = sadd.s32 %s68, 1
    %s70 = scalar_select %p67, %s68, %s69
    %p73 = pneg %p67
    %p74 = scmp.eq.s32.totalorder %s9, 1
    %p75 = por %p73, %p74
    %p76 = scmp.ne.s32.totalorder %s68, %s71
    %p77 = scmp.eq.s32.totalorder %s9, 0
    %p78 = por %p76, %p77
    %p79 = scmp.ne.s32.totalorder %s68, %s71
    %p80 = scmp.eq.s32.totalorder %s14, 1
    %p81 = por %p79, %p80
    %p82 = scmp.ne.s32.totalorder %s71, %s72
    %p83 = scmp.eq.s32.totalorder %s14, 0
    %p84 = por %p82, %p83
    %p85 = scmp.ne.s32.totalorder %s71, %s72
    %p86 = scmp.eq.s32.totalorder %s15, 1
    %p87 = por %p85, %p86
    %p89 = scmp.ne.s32.totalorder %s72, %s88
    %p90 = scmp.eq.s32.totalorder %s15, 0
    %p91 = por %p89, %p90
    %s92 = ssub.s32 %s17, %s31
    %p93 = scmp.eq.s32.totalorder %s92, 0
    %s95 = sadd.s32 %s94, 1
    %s96 = scalar_select %p93, %s94, %s95
    %p99 = pneg %p93
    %p100 = scmp.eq.s32.totalorder %s9, 1
    %p101 = por %p99, %p100
    %p102 = scmp.ne.s32.totalorder %s94, %s97
    %p103 = scmp.eq.s32.totalorder %s9, 0
    %p104 = por %p102, %p103
    %p105 = scmp.ne.s32.totalorder %s94, %s97
    %p106 = scmp.eq.s32.totalorder %s14, 1
    %p107 = por %p105, %p106
    %p108 = scmp.ne.s32.totalorder %s97, %s98
    %p109 = scmp.eq.s32.totalorder %s14, 0
    %p110 = por %p108, %p109
    %p111 = scmp.ne.s32.totalorder %s97, %s98
    %p112 = scmp.eq.s32.totalorder %s15, 1
    %p113 = por %p111, %p112
    %p115 = scmp.ne.s32.totalorder %s98, %s114
    %p116 = scmp.eq.s32.totalorder %s15, 0
    %p117 = por %p115, %p116
    %s118 = ssub.s32 %s16, %s35
    %s119 = ssub.s32 %s17, %s31
    %s120 = sor.u32 %s118, %s119
    %p121 = scmp.eq.s32.totalorder %s120, 0
    %s123 = sadd.s32 %s122, 1
    %s124 = scalar_select %p121, %s122, %s123
    %p127 = pneg %p121
    %p128 = scmp.eq.s32.totalorder %s9, 1
    %p129 = por %p127, %p128
    %p130 = scmp.ne.s32.totalorder %s122, %s125
    %p131 = scmp.eq.s32.totalorder %s9, 0
    %p132 = por %p130, %p131
    %p133 = scmp.ne.s32.totalorder %s122, %s125
    %p134 = scmp.eq.s32.totalorder %s14, 1
    %p135 = por %p133, %p134
    %p136 = scmp.ne.s32.totalorder %s125, %s126
    %p137 = scmp.eq.s32.totalorder %s14, 0
    %p138 = por %p136, %p137
    %p139 = scmp.ne.s32.totalorder %s125, %s126
    %p140 = scmp.eq.s32.totalorder %s15, 1
    %p141 = por %p139, %p140
    %p143 = scmp.ne.s32.totalorder %s126, %s142
    %p144 = scmp.eq.s32.totalorder %s15, 0
    %p145 = por %p143, %p144
    %p146 = scmp.le.s32.totalorder 1, %s9
    %p147 = scmp.lt.s32.totalorder %s9, 3
    %p148 = pnand %p146, %p147
    %p149 = pneg %p148
    // Predicated region
    $region9: #{tpu_custom_call.1} parent=5 // pred_check
      _
    $region10: #{tpu_custom_call.1} parent=5 // pred_check_branch
      %151 = sbr.rel (%p148) target = $region12
    $region11: #{tpu_custom_call.1} parent=5 // pred_region
      %s152 = ssub.s32 %s9, 1
      // Predicated region
      $region13: #{tpu_custom_call.1} parent=11 // pred_check
        %p153 = pneg %p84
      $region14: #{tpu_custom_call.1} parent=11 // pred_check_branch
        %155 = sbr.rel (%p153) target = $region16
      $region15: #{tpu_custom_call.1} parent=11 // pred_region
        %s156 = smul.u32 32, %s21
        %p157 = scmp.lt.s32.totalorder %s156, 31
        %s158 = scalar_select %p157, %s156, 31
        %p159 = scmp.lt.s32.totalorder %s20, 0
        %s160 = scalar_select %p159, %s20, 0
        %s161 = sadd.s32 %s160, %s158
        %s162 = smul.addr %s161, 4
        %s163 = scalar_lea.vmem %s1, %s162
        %s164 = smul.u32 32, %s21
      $region16: #{tpu_custom_call.1} parent=11 // pred_fallthru
        _
      // Predicated region
      $region17: #{tpu_custom_call.1} parent=11 // pred_check
        %p165 = pneg %p110
      $region18: #{tpu_custom_call.1} parent=11 // pred_check_branch
        %167 = sbr.rel (%p165) target = $region20
      $region19: #{tpu_custom_call.1} parent=11 // pred_region
        %p168 = scmp.lt.s32.totalorder %s20, 0
        %s169 = scalar_select %p168, %s20, 0
        %s170 = scalar_lea.vmem %s2, %s169
      $region20: #{tpu_custom_call.1} parent=11 // pred_fallthru
        _
    $region12: #{tpu_custom_call.1} parent=5 // pred_fallthru
      _
    %p171 = scmp.lt.s32.totalorder %s9, 2
    // Predicated region
    $region21: #{tpu_custom_call.1} parent=5 // pred_check
      %p172 = pneg %p171
    $region22: #{tpu_custom_call.1} parent=5 // pred_check_branch
      %174 = sbr.rel (%p172) target = $region24
    $region23: #{tpu_custom_call.1} parent=5 // pred_region
      // Predicated region
      $region25: #{tpu_custom_call.1} parent=23 // pred_check
        %p175 = pneg %p50
      $region26: #{tpu_custom_call.1} parent=23 // pred_check_branch
        %177 = sbr.rel (%p175) target = $region28
      $region27: #{tpu_custom_call.1} parent=23 // pred_region
        %s178 = smul.u32 8, %s16
        %s179 = smul.u32 2, %s18
        %p180 = scmp.lt.s32.totalorder %s178, 15
        %s181 = scalar_select %p180, %s178, 15
        %p182 = scmp.lt.s32.totalorder %s179, 1
        %s183 = scalar_select %p182, %s179, 1
        %s184 = smul.addr %s181, 2
        %s185 = sadd.s32 %s183, %s184
        %s186 = smul.addr %s185, 4
        %s187 = scalar_lea.vmem %s0, %s186
        %s188 = smul.u32 8, %s16
        %s189 = smul.u32 2, %s18
      $region28: #{tpu_custom_call.1} parent=23 // pred_fallthru
        _
    $region24: #{tpu_custom_call.1} parent=5 // pred_fallthru
      _
    %p190 = scmp.le.s32.totalorder 1, %s9
    %p191 = scmp.lt.s32.totalorder %s9, 3
    %p192 = pnand %p190, %p191
    %p193 = pneg %p192
    // Predicated region
    $region29: #{tpu_custom_call.1} parent=5 // pred_check
      _
    $region30: #{tpu_custom_call.1} parent=5 // pred_check_branch
      %195 = sbr.rel (%p192) target = $region32
    $region31: #{tpu_custom_call.1} parent=5 // pred_region
      %s196 = ssub.s32 %s9, 1
      %s197 = smul.u32 8, %s19
      %s198 = smul.u32 2, %s21
      %p199 = scmp.lt.s32.totalorder %s197, 15
      %s200 = scalar_select %p199, %s197, 15
      %p201 = scmp.lt.s32.totalorder %s198, 1
      %s202 = scalar_select %p201, %s198, 1
      %s203 = smul.addr %s200, 2
      %s204 = sadd.s32 %s202, %s203
      %s205 = smul.addr %s204, 4
      %s206 = scalar_lea.vmem %s0, %s205
      %p207 = pneg %p56
      %p208 = pneg %p53
      %s209 = smul.u32 32, %s21
      %p210 = scmp.lt.s32.totalorder %s209, 31
      %s211 = scalar_select %p210, %s209, 31
      %p212 = scmp.lt.s32.totalorder %s20, 0
      %s213 = scalar_select %p212, %s20, 0
      %s214 = sadd.s32 %s213, %s211
      %s215 = smul.addr %s214, 4
      %s216 = scalar_lea.vmem %s1, %s215
      %p217 = pneg %p84
      %p218 = pneg %p81
      %p219 = scmp.lt.s32.totalorder %s20, 0
      %s220 = scalar_select %p219, %s20, 0
      %s221 = scalar_lea.vmem %s2, %s220
      %p222 = pneg %p110
      %p223 = pneg %p107
      %p224 = pneg %p138
      %p225 = pneg %p135
      %s226 = smul.u32 8, %s19
      %p227 = scmp.lt.s32.totalorder %s226, 15
      %s228 = scalar_select %p227, %s226, 15
      %p229 = scmp.lt.s32.totalorder %s20, 0
      %s230 = scalar_select %p229, %s20, 0
      %s231 = sadd.s32 %s230, %s228
      %s232 = smul.addr %s231, 4
      %s233 = scalar_lea.vmem %s3, %s232
      %s234 = smul.u32 8, %s19
      %s235 = smul.u32 2, %s21
      %p236 = scmp.lt.s32.totalorder %s234, 15
      %s237 = scalar_select %p236, %s234, 15
      %p238 = scmp.lt.s32.totalorder %s235, 1
      %s239 = scalar_select %p238, %s235, 1
      %s240 = smul.addr %s237, 2
      %s241 = sadd.s32 %s239, %s240
      %s242 = smul.addr %s241, 4
      %s243 = scalar_lea.vmem %s0, %s242
      %s244 = smul.u32 8, %s19
      %s245 = smul.u32 2, %s21
      %s246 = smul.u32 32, %s21
      %p247 = scmp.lt.s32.totalorder %s246, 31
      %s248 = scalar_select %p247, %s246, 31
      %p249 = scmp.lt.s32.totalorder %s20, 0
      %s250 = scalar_select %p249, %s20, 0
      %s251 = sadd.s32 %s250, %s248
      %s252 = smul.addr %s251, 4
      %s253 = scalar_lea.vmem %s1, %s252
      %s254 = smul.u32 32, %s21
      %p255 = scmp.lt.s32.totalorder %s20, 0
      %s256 = scalar_select %p255, %s20, 0
      %s257 = scalar_lea.vmem %s2, %s256
      %s258 = smul.u32 8, %s19
      %p259 = scmp.lt.s32.totalorder %s258, 15
      %s260 = scalar_select %p259, %s258, 15
      %p261 = scmp.lt.s32.totalorder %s20, 0
      %s262 = scalar_select %p261, %s20, 0
      %s263 = sadd.s32 %s262, %s260
      %s264 = smul.addr %s263, 4
      %s265 = scalar_lea.vmem %s3, %s264
      %s266 = smul.u32 8, %s19
      %p267 = scmp.eq.s32.totalorder %s21, 0
      // Predicated region
      $region33: #{tpu_custom_call.1} parent=31 // pred_check
        %p268 = pneg %p267
      $region34: #{tpu_custom_call.1} parent=31 // pred_check_branch
        %270 = sbr.rel (%p268) target = $region36
      $region35: #{tpu_custom_call.1} parent=31 // pred_region
        %vm271 = vcmask 523264
        %272 = vst.msk [vmem:[#allocation2] sm:$0xff] %vm271, 0.0
        %273 = vst.msk [vmem:[#allocation2 + $0x8] sm:$0xff] %vm271, 0.0
        %274 = vst.msk [vmem:[#allocation2 + $0x10] sm:$0xff] %vm271, 0.0
        %275 = vst.msk [vmem:[#allocation2 + $0x18] sm:$0xff] %vm271, 0.0
        %276 = vst.msk [vmem:[#allocation2 + $0x20] sm:$0xff] %vm271, 0.0
        %277 = vst.msk [vmem:[#allocation2 + $0x28] sm:$0xff] %vm271, 0.0
        %278 = vst.msk [vmem:[#allocation2 + $0x30] sm:$0xff] %vm271, 0.0
        %279 = vst.msk [vmem:[#allocation2 + $0x38] sm:$0xff] %vm271, 0.0
      $region36: #{tpu_custom_call.1} parent=31 // pred_fallthru
        _
      %v280 = vld [vmem:[#allocation2] sm:$0xff]
      %v281 = vld [vmem:[#allocation2 + $0x8] sm:$0xff]
      %v282 = vld [vmem:[#allocation2 + $0x10] sm:$0xff]
      %v283 = vld [vmem:[#allocation2 + $0x18] sm:$0xff]
      %v284 = vld [vmem:[#allocation2 + $0x20] sm:$0xff]
      %v285 = vld [vmem:[#allocation2 + $0x28] sm:$0xff]
      %v286 = vld [vmem:[#allocation2 + $0x30] sm:$0xff]
      %v287 = vld [vmem:[#allocation2 + $0x38] sm:$0xff]
      %v288 = vld [vmem:[%s243] sm:$0xff]
      %v289 = vld [vmem:[%s243 + $0x8] sm:$0xff]
      %v290 = vld [vmem:[%s243 + $0x10] sm:$0xff]
      %v291 = vld [vmem:[%s243 + $0x18] sm:$0xff]
      %v292 = vld [vmem:[%s243 + $0x20] sm:$0xff]
      %v293 = vld [vmem:[%s243 + $0x28] sm:$0xff]
      %v294 = vld [vmem:[%s243 + $0x30] sm:$0xff]
      %v295 = vld [vmem:[%s243 + $0x38] sm:$0xff]
      %v296 = vld [vmem:[%s253] sm:$0xf]
      %v297 = vld [vmem:[%s253 + $0x4] sm:$0xf]
      %v298 = vld [vmem:[%s253 + $0x8] sm:$0xf]
      %v299 = vld [vmem:[%s253 + $0xc] sm:$0xf]
      %v300 = vld [vmem:[%s253 + $0x10] sm:$0xf]
      %v301 = vld [vmem:[%s253 + $0x14] sm:$0xf]
      %v302 = vld [vmem:[%s253 + $0x18] sm:$0xf]
      %v303 = vld [vmem:[%s253 + $0x1c] sm:$0xf]
      %v304 = vld [vmem:[%s253 + $0x20] sm:$0xf]
      %v305 = vld [vmem:[%s253 + $0x24] sm:$0xf]
      %v306 = vld [vmem:[%s253 + $0x28] sm:$0xf]
      %v307 = vld [vmem:[%s253 + $0x2c] sm:$0xf]
      %v308 = vld [vmem:[%s253 + $0x30] sm:$0xf]
      %v309 = vld [vmem:[%s253 + $0x34] sm:$0xf]
      %v310 = vld [vmem:[%s253 + $0x38] sm:$0xf]
      %v311 = vld [vmem:[%s253 + $0x3c] sm:$0xf]
      %v312 = vld [vmem:[%s253 + $0x40] sm:$0xf]
      %v313 = vld [vmem:[%s253 + $0x44] sm:$0xf]
      %v314 = vld [vmem:[%s253 + $0x48] sm:$0xf]
      %v315 = vld [vmem:[%s253 + $0x4c] sm:$0xf]
      %v316 = vld [vmem:[%s253 + $0x50] sm:$0xf]
      %v317 = vld [vmem:[%s253 + $0x54] sm:$0xf]
      %v318 = vld [vmem:[%s253 + $0x58] sm:$0xf]
      %v319 = vld [vmem:[%s253 + $0x5c] sm:$0xf]
      %v320 = vld [vmem:[%s253 + $0x60] sm:$0xf]
      %v321 = vld [vmem:[%s253 + $0x64] sm:$0xf]
      %v322 = vld [vmem:[%s253 + $0x68] sm:$0xf]
      %v323 = vld [vmem:[%s253 + $0x6c] sm:$0xf]
      %v324 = vld [vmem:[%s253 + $0x70] sm:$0xf]
      %v325 = vld [vmem:[%s253 + $0x74] sm:$0xf]
      %v326 = vld [vmem:[%s253 + $0x78] sm:$0xf]
      %v327 = vld [vmem:[%s253 + $0x7c] sm:$0xf]
      %v336 = vunpack.c.l.b16 %v288
      %v337 = vunpack.c.h.b16 %v288
      %v338 = vunpack.c.l.b16 %v289
      %v339 = vunpack.c.h.b16 %v289
      %v340 = vunpack.c.l.b16 %v290
      %v341 = vunpack.c.h.b16 %v290
      %v342 = vunpack.c.l.b16 %v291
      %v343 = vunpack.c.h.b16 %v291
      %v344 = vunpack.c.l.b16 %v292
      %v345 = vunpack.c.h.b16 %v292
      %v346 = vunpack.c.l.b16 %v293
      %v347 = vunpack.c.h.b16 %v293
      %v348 = vunpack.c.l.b16 %v294
      %v349 = vunpack.c.h.b16 %v294
      %v350 = vunpack.c.l.b16 %v295
      %v351 = vunpack.c.h.b16 %v295
      %v352 = vpack.c.b16 %v338, %v336
      %v353 = vpack.c.b16 %v339, %v337
      %v354 = vpack.c.b16 %v342, %v340
      %v355 = vpack.c.b16 %v343, %v341
      %v356 = vpack.c.b16 %v346, %v344
      %v357 = vpack.c.b16 %v347, %v345
      %v358 = vpack.c.b16 %v350, %v348
      %v359 = vpack.c.b16 %v351, %v349
      %v400 = vunpack.c.l.b16 %v296
      %v401 = vunpack.c.l.b16 %v297
      %v402 = vunpack.c.l.b16 %v298
      %v403 = vunpack.c.l.b16 %v299
      %v404 = vunpack.c.l.b16 %v300
      %v405 = vunpack.c.l.b16 %v301
      %v406 = vunpack.c.l.b16 %v302
      %v407 = vunpack.c.l.b16 %v303
      %v408 = vunpack.c.l.b16 %v304
      %v409 = vunpack.c.l.b16 %v305
      %v410 = vunpack.c.l.b16 %v306
      %v411 = vunpack.c.l.b16 %v307
      %v412 = vunpack.c.l.b16 %v308
      %v413 = vunpack.c.l.b16 %v309
      %v414 = vunpack.c.l.b16 %v310
      %v415 = vunpack.c.l.b16 %v311
      %v416 = vunpack.c.l.b16 %v312
      %v417 = vunpack.c.l.b16 %v313
      %v418 = vunpack.c.l.b16 %v314
      %v419 = vunpack.c.l.b16 %v315
      %v420 = vunpack.c.l.b16 %v316
      %v421 = vunpack.c.l.b16 %v317
      %v422 = vunpack.c.l.b16 %v318
      %v423 = vunpack.c.l.b16 %v319
      %v424 = vunpack.c.l.b16 %v320
      %v425 = vunpack.c.l.b16 %v321
      %v426 = vunpack.c.l.b16 %v322
      %v427 = vunpack.c.l.b16 %v323
      %v428 = vunpack.c.l.b16 %v324
      %v429 = vunpack.c.l.b16 %v325
      %v430 = vunpack.c.l.b16 %v326
      %v431 = vunpack.c.l.b16 %v327
      %v432 = vpack.c.b16 %v401, %v400
      %v433 = vpack.c.b16 %v403, %v402
      %v434 = vpack.c.b16 %v405, %v404
      %v435 = vpack.c.b16 %v407, %v406
      %v436 = vpack.c.b16 %v409, %v408
      %v437 = vpack.c.b16 %v411, %v410
      %v438 = vpack.c.b16 %v413, %v412
      %v439 = vpack.c.b16 %v415, %v414
      %v440 = vpack.c.b16 %v417, %v416
      %v441 = vpack.c.b16 %v419, %v418
      %v442 = vpack.c.b16 %v421, %v420
      %v443 = vpack.c.b16 %v423, %v422
      %v444 = vpack.c.b16 %v425, %v424
      %v445 = vpack.c.b16 %v427, %v426
      %v446 = vpack.c.b16 %v429, %v428
      %v447 = vpack.c.b16 %v431, %v430
      %464 = vmatpush.bf16.msra.mxu0 %v439
      %465 = vmatpush.bf16.msra.mxu0 %v438
      %466 = vmatpush.bf16.msra.mxu0 %v437
      %467 = vmatpush.bf16.msra.mxu0 %v436
      %468 = vmatpush.bf16.msra.mxu0 %v435
      %469 = vmatpush.bf16.msra.mxu0 %v434
      %470 = vmatpush.bf16.msra.mxu0 %v433
      %471 = vmatpush.bf16.msra.mxu0 %v432
      %472 = vmatmul.bf16.gmra.mxu0 %v352
      %v473 = vpop.f32.mrf.mxu0
      %v474 = vadd.f32 0.0, %v473
      %v475 = vpop.f32.mrf.mxu0
      %v476 = vadd.f32 0.0, %v475
      %477 = vmatmul.bf16.gmra.mxu0 %v354
      %v478 = vpop.f32.mrf.mxu0
      %v479 = vadd.f32 0.0, %v478
      %v480 = vpop.f32.mrf.mxu0
      %v481 = vadd.f32 0.0, %v480
      %482 = vmatmul.bf16.gmra.mxu0 %v356
      %v483 = vpop.f32.mrf.mxu0
      %v484 = vadd.f32 0.0, %v483
      %v485 = vpop.f32.mrf.mxu0
      %v486 = vadd.f32 0.0, %v485
      %487 = vmatmul.bf16.gmra.mxu0 %v358
      %v488 = vpop.f32.mrf.mxu0
      %v489 = vadd.f32 0.0, %v488
      %v490 = vpop.f32.mrf.mxu0
      %v491 = vadd.f32 0.0, %v490
      %492 = vdwg.mxu0
      %493 = vmatpush.bf16.msra.mxu0 %v447
      %494 = vmatpush.bf16.msra.mxu0 %v446
      %495 = vmatpush.bf16.msra.mxu0 %v445
      %496 = vmatpush.bf16.msra.mxu0 %v444
      %497 = vmatpush.bf16.msra.mxu0 %v443
      %498 = vmatpush.bf16.msra.mxu0 %v442
      %499 = vmatpush.bf16.msra.mxu0 %v441
      %500 = vmatpush.bf16.msra.mxu0 %v440
      %501 = vmatmul.bf16.gmra.mxu0 %v353
      %v502 = vpop.f32.mrf.mxu0
      %v503 = vadd.f32 %v474, %v502
      %v504 = vpop.f32.mrf.mxu0
      %v505 = vadd.f32 %v476, %v504
      %506 = vmatmul.bf16.gmra.mxu0 %v355
      %v507 = vpop.f32.mrf.mxu0
      %v508 = vadd.f32 %v479, %v507
      %v509 = vpop.f32.mrf.mxu0
      %v510 = vadd.f32 %v481, %v509
      %511 = vmatmul.bf16.gmra.mxu0 %v357
      %v512 = vpop.f32.mrf.mxu0
      %v513 = vadd.f32 %v484, %v512
      %v514 = vpop.f32.mrf.mxu0
      %v515 = vadd.f32 %v486, %v514
      %516 = vmatmul.bf16.gmra.mxu0 %v359
      %v517 = vpop.f32.mrf.mxu0
      %v518 = vadd.f32 %v489, %v517
      %v519 = vpop.f32.mrf.mxu0
      %v520 = vadd.f32 %v491, %v519
      %521 = vdwg.mxu0
      %v522 = vadd.f32 %v280, %v503
      %v523 = vadd.f32 %v281, %v505
      %v524 = vadd.f32 %v282, %v508
      %v525 = vadd.f32 %v283, %v510
      %v526 = vadd.f32 %v284, %v513
      %v527 = vadd.f32 %v285, %v515
      %v528 = vadd.f32 %v286, %v518
      %v529 = vadd.f32 %v287, %v520
      %vm530 = vcmask 523264
      %531 = vst.msk [vmem:[#allocation2] sm:$0xff] %vm530, %v522
      %532 = vst.msk [vmem:[#allocation2 + $0x8] sm:$0xff] %vm530, %v523
      %533 = vst.msk [vmem:[#allocation2 + $0x10] sm:$0xff] %vm530, %v524
      %534 = vst.msk [vmem:[#allocation2 + $0x18] sm:$0xff] %vm530, %v525
      %535 = vst.msk [vmem:[#allocation2 + $0x20] sm:$0xff] %vm530, %v526
      %536 = vst.msk [vmem:[#allocation2 + $0x28] sm:$0xff] %vm530, %v527
      %537 = vst.msk [vmem:[#allocation2 + $0x30] sm:$0xff] %vm530, %v528
      %538 = vst.msk [vmem:[#allocation2 + $0x38] sm:$0xff] %vm530, %v529
      // Predicated region
      $region37: #{tpu_custom_call.1} parent=31 // pred_check
        %p539 = pneg %p267
      $region38: #{tpu_custom_call.1} parent=31 // pred_check_branch
        %541 = sbr.rel (%p539) target = $region40
      $region39: #{tpu_custom_call.1} parent=31 // pred_region
        %v542 = vld [vmem:[#allocation2] sm:$0xff]
        %v543 = vld [vmem:[#allocation2 + $0x8] sm:$0xff]
        %v544 = vld [vmem:[#allocation2 + $0x10] sm:$0xff]
        %v545 = vld [vmem:[#allocation2 + $0x18] sm:$0xff]
        %v546 = vld [vmem:[#allocation2 + $0x20] sm:$0xff]
        %v547 = vld [vmem:[#allocation2 + $0x28] sm:$0xff]
        %v548 = vld [vmem:[#allocation2 + $0x30] sm:$0xff]
        %v549 = vld [vmem:[#allocation2 + $0x38] sm:$0xff]
        %v550 = vld [vmem:[%s257] sm:$0x1]
        %v552 = vperm.slane %v550, 0
        %v554 = vadd.f32 %v542, %v552
        %v555 = vadd.f32 %v543, %v552
        %v556 = vadd.f32 %v544, %v552
        %v557 = vadd.f32 %v545, %v552
        %v558 = vadd.f32 %v546, %v552
        %v559 = vadd.f32 %v547, %v552
        %v560 = vadd.f32 %v548, %v552
        %v561 = vadd.f32 %v549, %v552
        %v562 = vmax.f32 %v554, 0.0
        %v563 = vmax.f32 %v555, 0.0
        %v564 = vmax.f32 %v556, 0.0
        %v565 = vmax.f32 %v557, 0.0
        %v566 = vmax.f32 %v558, 0.0
        %v567 = vmax.f32 %v559, 0.0
        %v568 = vmax.f32 %v560, 0.0
        %v569 = vmax.f32 %v561, 0.0
        %v570 = vpack.c.bf16 %v562, %v562
        %v571 = vpack.c.bf16 %v563, %v563
        %v572 = vpack.c.bf16 %v564, %v564
        %v573 = vpack.c.bf16 %v565, %v565
        %v574 = vpack.c.bf16 %v566, %v566
        %v575 = vpack.c.bf16 %v567, %v567
        %v576 = vpack.c.bf16 %v568, %v568
        %v577 = vpack.c.bf16 %v569, %v569
        %vm578 = vcmask 519168
        %579 = vst.msk [vmem:[%s265] sm:$0xf] %vm578, %v570
        %580 = vst.msk [vmem:[%s265 + $0x4] sm:$0xf] %vm578, %v571
        %581 = vst.msk [vmem:[%s265 + $0x8] sm:$0xf] %vm578, %v572
        %582 = vst.msk [vmem:[%s265 + $0xc] sm:$0xf] %vm578, %v573
        %583 = vst.msk [vmem:[%s265 + $0x10] sm:$0xf] %vm578, %v574
        %584 = vst.msk [vmem:[%s265 + $0x14] sm:$0xf] %vm578, %v575
        %585 = vst.msk [vmem:[%s265 + $0x18] sm:$0xf] %vm578, %v576
        %586 = vst.msk [vmem:[%s265 + $0x1c] sm:$0xf] %vm578, %v577
      $region40: #{tpu_custom_call.1} parent=31 // pred_fallthru
        _
      %s587 = smul.u32 8, %s19
      %p588 = scmp.lt.s32.totalorder %s587, 15
      %s589 = scalar_select %p588, %s587, 15
      %p590 = scmp.lt.s32.totalorder %s20, 0
      %s591 = scalar_select %p590, %s20, 0
      %s592 = sadd.s32 %s591, %s589
      %s593 = smul.addr %s592, 4
      %s594 = scalar_lea.vmem %s3, %s593
      // Predicated region
      $region41: #{tpu_custom_call.1} parent=31 // pred_check
        %p595 = pneg %p135
      $region42: #{tpu_custom_call.1} parent=31 // pred_check_branch
        %597 = sbr.rel (%p595) target = $region44
      $region43: #{tpu_custom_call.1} parent=31 // pred_region
        %s598 = smul.u32 8, %s19
      $region44: #{tpu_custom_call.1} parent=31 // pred_fallthru
        _
    $region32: #{tpu_custom_call.1} parent=5 // pred_fallthru
      _
    %p599 = scmp.le.s32.totalorder 2, %s9
    // Predicated region
    $region45: #{tpu_custom_call.1} parent=5 // pred_check
      %p600 = pneg %p599
    $region46: #{tpu_custom_call.1} parent=5 // pred_check_branch
      %602 = sbr.rel (%p600) target = $region48
    $region47: #{tpu_custom_call.1} parent=5 // pred_region
      %s603 = ssub.s32 %s9, 2
      // Predicated region
      $region49: #{tpu_custom_call.1} parent=47 // pred_check
        %p604 = pneg %p141
      $region50: #{tpu_custom_call.1} parent=47 // pred_check_branch
        %606 = sbr.rel (%p604) target = $region52
      $region51: #{tpu_custom_call.1} parent=47 // pred_region
        %s607 = smul.u32 8, %s22
        %p608 = scmp.lt.s32.totalorder %s607, 15
        %s609 = scalar_select %p608, %s607, 15
        %p610 = scmp.lt.s32.totalorder %s23, 0
        %s611 = scalar_select %p610, %s23, 0
        %s612 = sadd.s32 %s611, %s609
        %s613 = smul.addr %s612, 4
        %s614 = scalar_lea.vmem %s3, %s613
      $region52: #{tpu_custom_call.1} parent=47 // pred_fallthru
        _
    $region48: #{tpu_custom_call.1} parent=5 // pred_fallthru
      _
  $region6: #{tpu_custom_call.1} parent=0 // loop_footer
    %s13 = sadd.s32 1, %s9
  $region7: #{tpu_custom_call.1} parent=0 // loop_footer_branch
    %8 = sbr.rel target = $region3
  $region8: #{tpu_custom_call.1} parent=0 // loop_exit
    _

</llo_original>
